<compile_context>
chip_gen: v7x
topology: tpu7x:2x2x1
jax: 0.10.0
libtpu: 0.0.40
codegen_flags: <defaults>
</compile_context>

<pallas_src>
import jax
import jax.numpy as jnp
from jax.experimental import pallas as pl
from jax.experimental.pallas import tpu as pltpu

LANE = 128      # lane width (last-dim granule)
SUBLANE = 8     # sublane granule (second-to-last dim granule)
_MIN_TILE = 256             # don't split batch tiles below this (per-step overhead dominates)
_PALLAS_MIN_BATCH = 512     # below this, plain jnp beats a 1-step pallas_call


def _round_up(n, m):
    return ((n + m - 1) // m) * m


def mlp_kernel(x_ref, w1_ref, b1_ref, w2_ref, b2_ref, o_ref):
    """One batch tile: o = relu(x @ w1 + b1) @ w2 + b2 (all f32)."""
    hi = jax.lax.Precision.HIGHEST
    # fc1 on the MXU, f32 accumulation; b1 is [1, hp] -> broadcasts over batch.
    h = jnp.dot(x_ref[...], w1_ref[...],
                preferred_element_type=jnp.float32, precision=hi)
    h = jnp.maximum(h + b1_ref[...], 0.0)
    # fc2: narrow (num_classes-wide) result -> masked but 16x smaller HBM store.
    o = jnp.dot(h, w2_ref[...],
                preferred_element_type=jnp.float32, precision=hi)
    o_ref[...] = o + b2_ref[...]


def prepare_params(w1, b1, w2, b2):
    """One-time parameter prep (do NOT redo per forward call):
       - weights already in [in, out] layout (PyTorch Linear stores [out, in]),
       - zero-pad ONLY the hidden dim up to 128 lanes (numerically exact:
         relu(0)=0 and the matching w2 rows are zero),
       - keep everything in f32 (kernel is memory/overhead bound, not MXU bound).
    """
    input_size, hidden = w1.shape
    hidden2, num_classes = w2.shape
    assert hidden == hidden2
    hp = _round_up(hidden, LANE)

    w1p = jnp.zeros((input_size, hp), jnp.float32).at[:, :hidden].set(w1)
    b1p = jnp.zeros((1, hp), jnp.float32).at[:, :hidden].set(b1)
    w2p = jnp.zeros((hp, num_classes), jnp.float32).at[:hidden, :].set(w2)
    b2p = b2.reshape(1, num_classes).astype(jnp.float32)
    return w1p, b1p, w2p, b2p


def _choose_batch_tile(B, batch_tile):
    """Pick a sublane-aligned batch tile.  Big tiles amortize the ~0.35us
    per-grid-step overhead; once the batch is large enough we force >= 2 tiles
    so the 'parallel' batch axis can be sharded across v7x's 2 TensorCores."""
    bp8 = _round_up(B, SUBLANE)
    if bp8 <= 2 * _MIN_TILE:
        return bp8                                   # one tile, full batch
    n_tiles = max(2, pl.cdiv(bp8, batch_tile))       # >= 2 tiles for megacore
    tb = _round_up(pl.cdiv(bp8, n_tiles), SUBLANE)
    return min(tb, batch_tile)


def mynet_forward(x, params, *, batch_tile=1024, force_pallas=False):
    """Forward pass: x [B, input_size] -> logits [B, num_classes] (f32)."""
    w1, b1, w2, b2 = params
    input_size, hp = w1.shape
    num_classes = w2.shape[1]

    x = x.astype(jnp.float32)        # mirrors x.to(torch.float32); no-op if already f32
    B = x.shape[0]

    if B < _PALLAS_MIN_BATCH and not force_pallas:
        # Tiny batch: a single-step pallas_call is pure launch overhead —
        # let XLA fuse the two small matmuls instead (same padded params).
        hi = jax.lax.Precision.HIGHEST
        h = jnp.maximum(jnp.dot(x, w1, precision=hi) + b1, 0.0)
        return jnp.dot(h, w2, precision=hi) + b2

    tb = _choose_batch_tile(B, batch_tile)
    bp = _round_up(B, tb)
    if bp != B:
        x = jnp.pad(x, ((0, bp - B), (0, 0)))
    grid = (bp // tb,)

    out = pl.pallas_call(
        mlp_kernel,
        out_shape=jax.ShapeDtypeStruct((bp, num_classes), jnp.float32),
        grid=grid,
        in_specs=[
            pl.BlockSpec((tb, input_size), lambda i: (i, 0)),   # x: tiled on batch
            pl.BlockSpec((input_size, hp), lambda i: (0, 0)),   # w1: VMEM-resident
            pl.BlockSpec((1, hp),          lambda i: (0, 0)),   # b1: VMEM-resident
            pl.BlockSpec((hp, num_classes), lambda i: (0, 0)),  # w2: VMEM-resident
            pl.BlockSpec((1, num_classes), lambda i: (0, 0)),   # b2: VMEM-resident
        ],
        out_specs=pl.BlockSpec((tb, num_classes), lambda i: (i, 0)),
        compiler_params=pltpu.CompilerParams(
            dimension_semantics=("parallel",)),   # megacore sharding on v7x
    )(x, w1, b1, w2, b2)

    # Only batch padding to strip (class dim is already exact); fuses into jit.
    return out[:B]


def init_params(key, input_size, hidden_size, num_classes):
    """PyTorch-style Linear init: U(-1/sqrt(fan_in), 1/sqrt(fan_in)).
    Weights returned already transposed to [in, out] for the kernel."""
    k1, k2, k3, k4 = jax.random.split(key, 4)
    bound1 = 1.0 / jnp.sqrt(jnp.float32(input_size))
    bound2 = 1.0 / jnp.sqrt(jnp.float32(hidden_size))
    w1 = jax.random.uniform(k1, (input_size, hidden_size), jnp.float32,
                            -bound1, bound1)
    b1 = jax.random.uniform(k2, (hidden_size,), jnp.float32, -bound1, bound1)
    w2 = jax.random.uniform(k3, (hidden_size, num_classes), jnp.float32,
                            -bound2, bound2)
    b2 = jax.random.uniform(k4, (num_classes,), jnp.float32, -bound2, bound2)
    return w1, b1, w2, b2


def _reference(x, w1, b1, w2, b2):
    hi = jax.lax.Precision.HIGHEST
    h = jnp.maximum(jnp.dot(x.astype(jnp.float32), w1, precision=hi) + b1, 0.0)
    return jnp.dot(h, w2, precision=hi) + b2


if __name__ == "__main__":
    # Small shapes consistent with the module's forward (Linear -> ReLU -> Linear).
    batch, input_size, hidden_size, num_classes = 8, 16, 32, 8

    key = jax.random.PRNGKey(0)
    kx, kp = jax.random.split(key)
    x = jax.random.normal(kx, (batch, input_size), jnp.float32)
    w1, b1, w2, b2 = init_params(kp, input_size, hidden_size, num_classes)

    # One-time param prep (hidden-dim pad only, stays f32).
    params = prepare_params(w1, b1, w2, b2)

    # 1) Force the Pallas kernel at the small test batch (single tile).
    fwd_pallas = jax.jit(lambda xx: mynet_forward(xx, params, force_pallas=True))
    out = jax.block_until_ready(fwd_pallas(x))
    ref = _reference(x, w1, b1, w2, b2)
    assert out.shape == (batch, num_classes)
    assert jnp.allclose(out, ref, atol=2e-2, rtol=2e-2)

    # 2) Larger batch: exercises the multi-tile grid (>=2 tiles for v7x's two
    #    TensorCores), batch padding, and the narrow masked output store.
    x_big = jax.random.normal(kx, (1500, input_size), jnp.float32)
    out_big = jax.block_until_ready(
        jax.jit(lambda xx: mynet_forward(xx, params))(x_big))
    ref_big = _reference(x_big, w1, b1, w2, b2)
    assert out_big.shape == (1500, num_classes)
    assert jnp.allclose(out_big, ref_big, atol=2e-2, rtol=2e-2)

    # 3) Small-batch dispatcher path (plain fused jnp) stays consistent too.
    out_small = jax.block_until_ready(
        jax.jit(lambda xx: mynet_forward(xx, params))(x))
    assert jnp.allclose(out_small, ref, atol=2e-2, rtol=2e-2)

    print("KERNEL_OK")
</pallas_src>

<mosaic_0001>
module attributes {stable_mosaic.version = 11 : i64} {
  func.func @mlp_kernel(%arg0: i32, %arg1: memref<8x16xf32, #tpu.memory_space<vmem>>, %arg2: memref<16x128xf32, #tpu.memory_space<vmem>>, %arg3: memref<1x128xf32, #tpu.memory_space<vmem>>, %arg4: memref<128x8xf32, #tpu.memory_space<vmem>>, %arg5: memref<1x8xf32, #tpu.memory_space<vmem>>, %arg6: memref<8x8xf32, #tpu.memory_space<vmem>>) attributes {dimension_semantics = [#tpu.dimension_semantics<parallel>], iteration_bounds = array<i64: 1>, scalar_prefetch = 0 : i64, scratch_operands = 0 : i64, tpu.core_type = #tpu.core_type<tc>, window_params = [{transform_indices = @transform_0, window_bounds = array<i64: 8, 16>}, {pipeline_mode = #tpu.pipeline_mode<synchronous>, transform_indices = @transform_1, window_bounds = array<i64: 16, 128>}, {pipeline_mode = #tpu.pipeline_mode<synchronous>, transform_indices = @transform_2, window_bounds = array<i64: 1, 128>}, {pipeline_mode = #tpu.pipeline_mode<synchronous>, transform_indices = @transform_3, window_bounds = array<i64: 128, 8>}, {pipeline_mode = #tpu.pipeline_mode<synchronous>, transform_indices = @transform_4, window_bounds = array<i64: 1, 8>}, {transform_indices = @transform_5, window_bounds = array<i64: 8, 8>}]} {
    %c0 = arith.constant 0 : index
    %c0_0 = arith.constant 0 : index
    %0 = vector.load %arg1[%c0, %c0_0] : memref<8x16xf32, #tpu.memory_space<vmem>>, vector<8x16xf32>
    %c0_1 = arith.constant 0 : index
    %c0_2 = arith.constant 0 : index
    %1 = vector.load %arg2[%c0_1, %c0_2] : memref<16x128xf32, #tpu.memory_space<vmem>>, vector<16x128xf32>
    %cst = arith.constant dense<0.000000e+00> : vector<8x128xf32>
    %2 = tpu.matmul %0, %1, %cst {dimension_numbers = #tpu.dot_dimension_numbers<[1], [0], [0], [1], [0, 0, 1, 1], [], []>, precision = #tpu.contract_precision<fp32>} : vector<8x16xf32>, vector<16x128xf32>, vector<8x128xf32> -> vector<8x128xf32>
    %c0_3 = arith.constant 0 : index
    %c0_4 = arith.constant 0 : index
    %3 = vector.load %arg3[%c0_3, %c0_4] : memref<1x128xf32, #tpu.memory_space<vmem>>, vector<1x128xf32>
    %4 = vector.broadcast %3 : vector<1x128xf32> to vector<8x128xf32>
    %5 = arith.addf %2, %4 : vector<8x128xf32>
    %cst_5 = arith.constant 0.000000e+00 : f32
    %6 = vector.broadcast %cst_5 : f32 to vector<8x128xf32>
    %7 = arith.maximumf %5, %6 : vector<8x128xf32>
    %c0_6 = arith.constant 0 : index
    %c0_7 = arith.constant 0 : index
    %8 = vector.load %arg4[%c0_6, %c0_7] : memref<128x8xf32, #tpu.memory_space<vmem>>, vector<128x8xf32>
    %cst_8 = arith.constant dense<0.000000e+00> : vector<8x8xf32>
    %9 = tpu.matmul %7, %8, %cst_8 {dimension_numbers = #tpu.dot_dimension_numbers<[1], [0], [0], [1], [0, 0, 1, 1], [], []>, precision = #tpu.contract_precision<fp32>} : vector<8x128xf32>, vector<128x8xf32>, vector<8x8xf32> -> vector<8x8xf32>
    %c0_9 = arith.constant 0 : index
    %c0_10 = arith.constant 0 : index
    %10 = vector.load %arg5[%c0_9, %c0_10] : memref<1x8xf32, #tpu.memory_space<vmem>>, vector<1x8xf32>
    %11 = vector.broadcast %10 : vector<1x8xf32> to vector<8x8xf32>
    %12 = arith.addf %9, %11 : vector<8x8xf32>
    %c0_11 = arith.constant 0 : index
    %c0_12 = arith.constant 0 : index
    %13 = vector.load %arg6[%c0_11, %c0_12] : memref<8x8xf32, #tpu.memory_space<vmem>>, vector<8x8xf32>
    tpu.vector_store %arg6[%c0_11, %c0_12], %12 {strides = array<i32>} : memref<8x8xf32, #tpu.memory_space<vmem>>, vector<8x8xf32>,
    return
  }
  func.func @transform_0(%arg0: i32) -> (i32, i32) {
    %c0_i32 = arith.constant 0 : i32
    %c0_i32_0 = arith.constant 0 : i32
    return %arg0, %c0_i32 : i32, i32
  }
  func.func @transform_1(%arg0: i32) -> (i32, i32) {
    %c0_i32 = arith.constant 0 : i32
    %c0_i32_0 = arith.constant 0 : i32
    %c0_i32_1 = arith.constant 0 : i32
    return %c0_i32, %c0_i32_0 : i32, i32
  }
  func.func @transform_2(%arg0: i32) -> (i32, i32) {
    %c0_i32 = arith.constant 0 : i32
    %c0_i32_0 = arith.constant 0 : i32
    %c0_i32_1 = arith.constant 0 : i32
    return %c0_i32, %c0_i32_0 : i32, i32
  }
  func.func @transform_3(%arg0: i32) -> (i32, i32) {
    %c0_i32 = arith.constant 0 : i32
    %c0_i32_0 = arith.constant 0 : i32
    %c0_i32_1 = arith.constant 0 : i32
    return %c0_i32, %c0_i32_0 : i32, i32
  }
  func.func @transform_4(%arg0: i32) -> (i32, i32) {
    %c0_i32 = arith.constant 0 : i32
    %c0_i32_0 = arith.constant 0 : i32
    %c0_i32_1 = arith.constant 0 : i32
    return %c0_i32, %c0_i32_0 : i32, i32
  }
  func.func @transform_5(%arg0: i32) -> (i32, i32) {
    %c0_i32 = arith.constant 0 : i32
    %c0_i32_0 = arith.constant 0 : i32
    return %arg0, %c0_i32 : i32, i32
  }
}

</mosaic_0001>

<llo_original>
// kernel: _lambda_.1
$region0: #{_lambda_.1}
  #allocation0 [shape = 'u32[]', space=smem, size = 0x4, offset = 0x4, fixed_abs, tag = 'smem constant byte address 0x4 - core index']
  #allocation1 [shape = 'u32[144,128]{1,0:T(1,128)}', space=vmem, size = 0x12000, scoped, tag = 'internal scratch']
  %s0 = inlined_call_operand.hbm [shape: f32[8,16], index: 0, kind: input, shape index: {}]
  %s1 = inlined_call_operand.hbm [shape: f32[16,128], index: 1, kind: input, shape index: {}]
  %s2 = inlined_call_operand.vmem [shape: f32[1,128], index: 2, kind: input, shape index: {}]
  %s3 = inlined_call_operand.hbm [shape: f32[128,8], index: 3, kind: input, shape index: {}]
  %s4 = inlined_call_operand.vmem [shape: f32[1,8], index: 4, kind: input, shape index: {}]
  %s5 = inlined_call_operand.hbm [shape: f32[8,8], index: 5, kind: output, shape index: {}]
  %s6 = sld [smem:[#allocation0]]
  $region42: #{_lambda_.1} parent=0
    _
  %s8 = ssub.s32 1, %s6
  %s9 = scalar_select 0, %s8, %s6
  $region1: #{_lambda_.1} parent=0
    #allocation2 [shape = 'u8[4096]{0}', space=vmem, size = 0x1000, scoped, tag = 'input window, operand 0, single buffered']
    #allocation3 [shape = 's32[1]{0}', space=sflag, size = 0x4, scoped, tag = 'scoped memory for _lambda_.1']
    #allocation4 [shape = 's32[1]{0}', space=sflag, size = 0x4, scoped, tag = 'scoped memory for _lambda_.1']
    #allocation5 [shape = 'u8[8192]{0}', space=vmem, size = 0x2000, scoped, tag = 'input window, operand 1, single buffered']
    #allocation6 [shape = 's32[1]{0}', space=sflag, size = 0x4, scoped, tag = 'scoped memory for _lambda_.1']
    #allocation7 [shape = 'u8[65536]{0}', space=vmem, size = 0x10000, scoped, tag = 'input window, operand 3, single buffered']
    #allocation8 [shape = 'u8[4096]{0}', space=vmem, size = 0x1000, scoped, tag = 'output window, operand 0, single buffered']
    %10 = vsyncpa [#allocation3], 0
    %11 = vsyncpa [#allocation6], 0
    %12 = vsyncpa [#allocation4], 0
    // Predicated region
    $region2: #{_lambda_.1} parent=1 // pred_check
      _
    $region3: #{_lambda_.1} parent=1 // pred_check_branch
      %14 = sbr.rel (0) target = $region5
    $region4: #{_lambda_.1} parent=1 // pred_region
      %s16 = ssub.s32 128, 128
      %17 = vsyncadd [#allocation3], %s16
      %s19 = sshll.u32 [#allocation2], 4
      %s20 = int_to_ptr.vmem [resolvable:$true] %s19
      %22 = dma.hbm_to_vmem [thread:$0]  %s0, 128, %s20, [#allocation3]
    $region5: #{_lambda_.1} parent=1 // pred_fallthru
      _
    // Predicated region
    $region6: #{_lambda_.1} parent=1 // pred_check
      _
    $region7: #{_lambda_.1} parent=1 // pred_check_branch
      %24 = sbr.rel (0) target = $region9
    $region8: #{_lambda_.1} parent=1 // pred_region
      %s26 = ssub.s32 256, 256
      %27 = vsyncadd [#allocation6], %s26
      %s28 = sshll.u32 [#allocation5], 4
      %s29 = int_to_ptr.vmem [resolvable:$true] %s28
      %34 = dma.hbm_to_vmem [thread:$0]  %s1, 256, %s29, [#allocation6], 128, 128, 8
    $region9: #{_lambda_.1} parent=1 // pred_fallthru
      _
    // Predicated region
    $region10: #{_lambda_.1} parent=1 // pred_check
      _
    $region11: #{_lambda_.1} parent=1 // pred_check_branch
      %36 = sbr.rel (0) target = $region13
    $region12: #{_lambda_.1} parent=1 // pred_region
      _
    $region13: #{_lambda_.1} parent=1 // pred_fallthru
      _
    // Predicated region
    $region14: #{_lambda_.1} parent=1 // pred_check
      _
    $region15: #{_lambda_.1} parent=1 // pred_check_branch
      %38 = sbr.rel (0) target = $region17
    $region16: #{_lambda_.1} parent=1 // pred_region
      %s40 = ssub.s32 2048, 2048
      %41 = vsyncadd [#allocation6], %s40
      %s42 = sshll.u32 [#allocation7], 4
      %s43 = int_to_ptr.vmem [resolvable:$true] %s42
      %48 = dma.hbm_to_vmem [thread:$0]  %s3, 2048, %s43, [#allocation6], 128, 128, 8
    $region17: #{_lambda_.1} parent=1 // pred_fallthru
      _
    // Predicated region
    $region18: #{_lambda_.1} parent=1 // pred_check
      _
    $region19: #{_lambda_.1} parent=1 // pred_check_branch
      %50 = sbr.rel (0) target = $region21
    $region20: #{_lambda_.1} parent=1 // pred_region
      _
    $region21: #{_lambda_.1} parent=1 // pred_fallthru
      _
    // Predicated region
    $region22: #{_lambda_.1} parent=1 // pred_check
      _
    $region23: #{_lambda_.1} parent=1 // pred_check_branch
      %52 = sbr.rel (0) target = $region25
    $region24: #{_lambda_.1} parent=1 // pred_region
      %53 = dma.done [#allocation3], 128
    $region25: #{_lambda_.1} parent=1 // pred_fallthru
      _
    // Predicated region
    $region26: #{_lambda_.1} parent=1 // pred_check
      _
    $region27: #{_lambda_.1} parent=1 // pred_check_branch
      %55 = sbr.rel (0) target = $region29
    $region28: #{_lambda_.1} parent=1 // pred_region
      %56 = dma.done [#allocation6], 256
    $region29: #{_lambda_.1} parent=1 // pred_fallthru
      _
    // Predicated region
    $region30: #{_lambda_.1} parent=1 // pred_check
      _
    $region31: #{_lambda_.1} parent=1 // pred_check_branch
      %58 = sbr.rel (0) target = $region33
    $region32: #{_lambda_.1} parent=1 // pred_region
      %59 = dma.done [#allocation6], 2048
    $region33: #{_lambda_.1} parent=1 // pred_fallthru
      _
    %v60 = vld [vmem:[#allocation2] sm:$0xff]
    %v61 = vld [vmem:[#allocation5] sm:$0xff]
    %v62 = vld [vmem:[#allocation5 + $0x8] sm:$0xff]
    %v63 = vld [vmem:[%s2] sm:$0x1]
    %v65 = vlaneseq
    %v66 = vshrl.u32 %v65, 7
    %v67 = vsub.s32 0, %v66
    %v68 = vrot.slane %v63, %v67
    %vm70 = vcmask 130048
    %v72 = vsel %vm70, %v60, 0
    %74 = vmatprep.subr.mxu0 0.0
    %v75 = vand.u32 %v61, 4294901760
    %76 = vmatpush1.msra.mxu0 %v75
    %77 = vmatprep.subr.mxu0 0.0
    %v78 = vand.u32 %v62, 4294901760
    %79 = vmatpush1.msra.mxu0 %v78
    %80 = vmatprep.subr.mxu0 0.0
    %81 = vmatpush1.msra.mxu0 0.0
    %82 = vmatprep.subr.mxu0 0.0
    %83 = vmatpush1.msra.mxu0 0.0
    %84 = vmatprep.subr.mxu0 0.0
    %85 = vmatpush1.msra.mxu0 0.0
    %86 = vmatprep.subr.mxu0 0.0
    %87 = vmatpush1.msra.mxu0 0.0
    %88 = vmatprep.subr.mxu0 0.0
    %89 = vmatpush1.msra.mxu0 0.0
    %90 = vmatprep.subr.mxu0 0.0
    %91 = vmatpush1.msra.mxu0 0.0
    %92 = vmatprep.subr.mxu0 0.0
    %93 = vmatpush1.msra.mxu0 0.0
    %94 = vmatprep.subr.mxu0 0.0
    %95 = vmatpush1.msra.mxu0 0.0
    %96 = vmatprep.subr.mxu0 0.0
    %97 = vmatpush1.msra.mxu0 0.0
    %98 = vmatprep.subr.mxu0 0.0
    %99 = vmatpush1.msra.mxu0 0.0
    %100 = vmatprep.subr.mxu0 0.0
    %101 = vmatpush1.msra.mxu0 0.0
    %102 = vmatprep.subr.mxu0 0.0
    %103 = vmatpush1.msra.mxu0 0.0
    %104 = vmatprep.subr.mxu0 0.0
    %105 = vmatpush1.msra.mxu0 0.0
    %106 = vmatprep.subr.mxu0 0.0
    %107 = vmatpush1.msra.mxu0 0.0
    %108 = vmatprep.subr.mxu0 0.0
    %109 = vmatpush1.msra.mxu0 0.0
    %110 = vmatprep.subr.mxu0 0.0
    %111 = vmatpush1.msra.mxu0 0.0
    %112 = vmatprep.subr.mxu0 0.0
    %113 = vmatpush1.msra.mxu0 0.0
    %114 = vmatprep.subr.mxu0 0.0
    %115 = vmatpush1.msra.mxu0 0.0
    %116 = vmatprep.subr.mxu0 0.0
    %117 = vmatpush1.msra.mxu0 0.0
    %118 = vmatprep.subr.mxu0 0.0
    %119 = vmatpush1.msra.mxu0 0.0
    %120 = vmatprep.subr.mxu0 0.0
    %121 = vmatpush1.msra.mxu0 0.0
    %122 = vmatprep.subr.mxu0 0.0
    %123 = vmatpush1.msra.mxu0 0.0
    %124 = vmatprep.subr.mxu0 0.0
    %125 = vmatpush1.msra.mxu0 0.0
    %126 = vmatprep.subr.mxu0 0.0
    %127 = vmatpush1.msra.mxu0 0.0
    %128 = vmatprep.subr.mxu0 0.0
    %129 = vmatpush1.msra.mxu0 0.0
    %130 = vmatprep.subr.mxu0 0.0
    %131 = vmatpush1.msra.mxu0 0.0
    %132 = vmatprep.subr.mxu0 0.0
    %133 = vmatpush1.msra.mxu0 0.0
    %134 = vmatprep.subr.mxu0 0.0
    %135 = vmatpush1.msra.mxu0 0.0
    %136 = vmatprep.subr.mxu0 0.0
    %137 = vmatpush1.msra.mxu0 0.0
    %138 = vmatprep.subr.mxu0 0.0
    %139 = vmatpush1.msra.mxu0 0.0
    %140 = vmatprep.mubr.f32.mxu0 0.0
    %v141 = vand.u32 %v72, 4294901760
    %v142 = vsub.f32 %v72, %v141
    %v143 = vand.u32 %v142, 4294901760
    %v144 = vsub.f32 %v142, %v143
    %v145 = vand.u32 %v144, 4294901760
    %146 = vmatmul.mubr.f32.gmra.mrb[0].mxu0 %v145
    %v147 = vpop.f32.mrb[0].mxu0
    %v148 = vadd.f32 %v68, %v147
    %v149 = vpop.f32.mrb[0].mxu0
    %150 = vdwg.mxu0
    %151 = vmatprep.subr.mxu0 0.0
    %v152 = vand.u32 %v61, 4294901760
    %v153 = vsub.f32 %v61, %v152
    %v154 = vand.u32 %v153, 4294901760
    %v155 = vsub.f32 %v153, %v154
    %v156 = vand.u32 %v155, 4294901760
    %157 = vmatpush1.msra.mxu0 %v156
    %158 = vmatprep.subr.mxu0 0.0
    %v159 = vand.u32 %v62, 4294901760
    %v160 = vsub.f32 %v62, %v159
    %v161 = vand.u32 %v160, 4294901760
    %v162 = vsub.f32 %v160, %v161
    %v163 = vand.u32 %v162, 4294901760
    %164 = vmatpush1.msra.mxu0 %v163
    %165 = vmatprep.subr.mxu0 0.0
    %166 = vmatpush1.msra.mxu0 0.0
    %167 = vmatprep.subr.mxu0 0.0
    %168 = vmatpush1.msra.mxu0 0.0
    %169 = vmatprep.subr.mxu0 0.0
    %170 = vmatpush1.msra.mxu0 0.0
    %171 = vmatprep.subr.mxu0 0.0
    %172 = vmatpush1.msra.mxu0 0.0
    %173 = vmatprep.subr.mxu0 0.0
    %174 = vmatpush1.msra.mxu0 0.0
    %175 = vmatprep.subr.mxu0 0.0
    %176 = vmatpush1.msra.mxu0 0.0
    %177 = vmatprep.subr.mxu0 0.0
    %178 = vmatpush1.msra.mxu0 0.0
    %179 = vmatprep.subr.mxu0 0.0
    %180 = vmatpush1.msra.mxu0 0.0
    %181 = vmatprep.subr.mxu0 0.0
    %182 = vmatpush1.msra.mxu0 0.0
    %183 = vmatprep.subr.mxu0 0.0
    %184 = vmatpush1.msra.mxu0 0.0
    %185 = vmatprep.subr.mxu0 0.0
    %186 = vmatpush1.msra.mxu0 0.0
    %187 = vmatprep.subr.mxu0 0.0
    %188 = vmatpush1.msra.mxu0 0.0
    %189 = vmatprep.subr.mxu0 0.0
    %190 = vmatpush1.msra.mxu0 0.0
    %191 = vmatprep.subr.mxu0 0.0
    %192 = vmatpush1.msra.mxu0 0.0
    %193 = vmatprep.subr.mxu0 0.0
    %194 = vmatpush1.msra.mxu0 0.0
    %195 = vmatprep.subr.mxu0 0.0
    %196 = vmatpush1.msra.mxu0 0.0
    %197 = vmatprep.subr.mxu0 0.0
    %198 = vmatpush1.msra.mxu0 0.0
    %199 = vmatprep.subr.mxu0 0.0
    %200 = vmatpush1.msra.mxu0 0.0
    %201 = vmatprep.subr.mxu0 0.0
    %202 = vmatpush1.msra.mxu0 0.0
    %203 = vmatprep.subr.mxu0 0.0
    %204 = vmatpush1.msra.mxu0 0.0
    %205 = vmatprep.subr.mxu0 0.0
    %206 = vmatpush1.msra.mxu0 0.0
    %207 = vmatprep.subr.mxu0 0.0
    %208 = vmatpush1.msra.mxu0 0.0
    %209 = vmatprep.subr.mxu0 0.0
    %210 = vmatpush1.msra.mxu0 0.0
    %211 = vmatprep.subr.mxu0 0.0
    %212 = vmatpush1.msra.mxu0 0.0
    %213 = vmatprep.subr.mxu0 0.0
    %214 = vmatpush1.msra.mxu0 0.0
    %215 = vmatprep.subr.mxu0 0.0
    %216 = vmatpush1.msra.mxu0 0.0
    %217 = vmatprep.subr.mxu0 0.0
    %218 = vmatpush1.msra.mxu0 0.0
    %219 = vmatprep.subr.mxu0 0.0
    %220 = vmatpush1.msra.mxu0 0.0
    %221 = vmatprep.subr.mxu0 0.0
    %222 = vmatpush1.msra.mxu0 0.0
    %223 = vmatprep.subr.mxu0 0.0
    %224 = vmatpush1.msra.mxu0 0.0
    %225 = vmatprep.mubr.f32.mxu0 0.0
    %v226 = vand.u32 %v72, 4294901760
    %227 = vmatmul.mubr.f32.gmra.mrb[0].mxu0 %v226
    %v228 = vpop.f32.mrb[0].mxu0
    %v229 = vadd.f32 %v148, %v228
    %v230 = vpop.f32.mrb[0].mxu0
    %231 = vdwg.mxu0
    %232 = vmatprep.subr.mxu0 0.0
    %v233 = vand.u32 %v61, 4294901760
    %v234 = vsub.f32 %v61, %v233
    %235 = vmatpush1.msra.mxu0 %v234
    %236 = vmatprep.subr.mxu0 0.0
    %v237 = vand.u32 %v62, 4294901760
    %v238 = vsub.f32 %v62, %v237
    %239 = vmatpush1.msra.mxu0 %v238
    %240 = vmatprep.subr.mxu0 0.0
    %241 = vmatpush1.msra.mxu0 0.0
    %242 = vmatprep.subr.mxu0 0.0
    %243 = vmatpush1.msra.mxu0 0.0
    %244 = vmatprep.subr.mxu0 0.0
    %245 = vmatpush1.msra.mxu0 0.0
    %246 = vmatprep.subr.mxu0 0.0
    %247 = vmatpush1.msra.mxu0 0.0
    %248 = vmatprep.subr.mxu0 0.0
    %249 = vmatpush1.msra.mxu0 0.0
    %250 = vmatprep.subr.mxu0 0.0
    %251 = vmatpush1.msra.mxu0 0.0
    %252 = vmatprep.subr.mxu0 0.0
    %253 = vmatpush1.msra.mxu0 0.0
    %254 = vmatprep.subr.mxu0 0.0
    %255 = vmatpush1.msra.mxu0 0.0
    %256 = vmatprep.subr.mxu0 0.0
    %257 = vmatpush1.msra.mxu0 0.0
    %258 = vmatprep.subr.mxu0 0.0
    %259 = vmatpush1.msra.mxu0 0.0
    %260 = vmatprep.subr.mxu0 0.0
    %261 = vmatpush1.msra.mxu0 0.0
    %262 = vmatprep.subr.mxu0 0.0
    %263 = vmatpush1.msra.mxu0 0.0
    %264 = vmatprep.subr.mxu0 0.0
    %265 = vmatpush1.msra.mxu0 0.0
    %266 = vmatprep.subr.mxu0 0.0
    %267 = vmatpush1.msra.mxu0 0.0
    %268 = vmatprep.subr.mxu0 0.0
    %269 = vmatpush1.msra.mxu0 0.0
    %270 = vmatprep.subr.mxu0 0.0
    %271 = vmatpush1.msra.mxu0 0.0
    %272 = vmatprep.subr.mxu0 0.0
    %273 = vmatpush1.msra.mxu0 0.0
    %274 = vmatprep.subr.mxu0 0.0
    %275 = vmatpush1.msra.mxu0 0.0
    %276 = vmatprep.subr.mxu0 0.0
    %277 = vmatpush1.msra.mxu0 0.0
    %278 = vmatprep.subr.mxu0 0.0
    %279 = vmatpush1.msra.mxu0 0.0
    %280 = vmatprep.subr.mxu0 0.0
    %281 = vmatpush1.msra.mxu0 0.0
    %282 = vmatprep.subr.mxu0 0.0
    %283 = vmatpush1.msra.mxu0 0.0
    %284 = vmatprep.subr.mxu0 0.0
    %285 = vmatpush1.msra.mxu0 0.0
    %286 = vmatprep.subr.mxu0 0.0
    %287 = vmatpush1.msra.mxu0 0.0
    %288 = vmatprep.subr.mxu0 0.0
    %289 = vmatpush1.msra.mxu0 0.0
    %290 = vmatprep.subr.mxu0 0.0
    %291 = vmatpush1.msra.mxu0 0.0
    %292 = vmatprep.subr.mxu0 0.0
    %293 = vmatpush1.msra.mxu0 0.0
    %294 = vmatprep.subr.mxu0 0.0
    %295 = vmatpush1.msra.mxu0 0.0
    %296 = vmatprep.subr.mxu0 0.0
    %297 = vmatpush1.msra.mxu0 0.0
    %298 = vmatprep.subr.mxu0 0.0
    %299 = vmatpush1.msra.mxu0 0.0
    %300 = vmatprep.mubr.f32.mxu0 0.0
    %v301 = vand.u32 %v72, 4294901760
    %v302 = vsub.f32 %v72, %v301
    %303 = vmatmul.mubr.f32.gmra.mrb[0].mxu0 %v302
    %v304 = vpop.f32.mrb[0].mxu0
    %v305 = vadd.f32 %v229, %v304
    %v306 = vpop.f32.mrb[0].mxu0
    %307 = vdwg.mxu0
    %308 = vmatprep.subr.mxu0 0.0
    %v309 = vand.u32 %v61, 4294901760
    %310 = vmatpush1.msra.mxu0 %v309
    %311 = vmatprep.subr.mxu0 0.0
    %v312 = vand.u32 %v62, 4294901760
    %313 = vmatpush1.msra.mxu0 %v312
    %314 = vmatprep.subr.mxu0 0.0
    %315 = vmatpush1.msra.mxu0 0.0
    %316 = vmatprep.subr.mxu0 0.0
    %317 = vmatpush1.msra.mxu0 0.0
    %318 = vmatprep.subr.mxu0 0.0
    %319 = vmatpush1.msra.mxu0 0.0
    %320 = vmatprep.subr.mxu0 0.0
    %321 = vmatpush1.msra.mxu0 0.0
    %322 = vmatprep.subr.mxu0 0.0
    %323 = vmatpush1.msra.mxu0 0.0
    %324 = vmatprep.subr.mxu0 0.0
    %325 = vmatpush1.msra.mxu0 0.0
    %326 = vmatprep.subr.mxu0 0.0
    %327 = vmatpush1.msra.mxu0 0.0
    %328 = vmatprep.subr.mxu0 0.0
    %329 = vmatpush1.msra.mxu0 0.0
    %330 = vmatprep.subr.mxu0 0.0
    %331 = vmatpush1.msra.mxu0 0.0
    %332 = vmatprep.subr.mxu0 0.0
    %333 = vmatpush1.msra.mxu0 0.0
    %334 = vmatprep.subr.mxu0 0.0
    %335 = vmatpush1.msra.mxu0 0.0
    %336 = vmatprep.subr.mxu0 0.0
    %337 = vmatpush1.msra.mxu0 0.0
    %338 = vmatprep.subr.mxu0 0.0
    %339 = vmatpush1.msra.mxu0 0.0
    %340 = vmatprep.subr.mxu0 0.0
    %341 = vmatpush1.msra.mxu0 0.0
    %342 = vmatprep.subr.mxu0 0.0
    %343 = vmatpush1.msra.mxu0 0.0
    %344 = vmatprep.subr.mxu0 0.0
    %345 = vmatpush1.msra.mxu0 0.0
    %346 = vmatprep.subr.mxu0 0.0
    %347 = vmatpush1.msra.mxu0 0.0
    %348 = vmatprep.subr.mxu0 0.0
    %349 = vmatpush1.msra.mxu0 0.0
    %350 = vmatprep.subr.mxu0 0.0
    %351 = vmatpush1.msra.mxu0 0.0
    %352 = vmatprep.subr.mxu0 0.0
    %353 = vmatpush1.msra.mxu0 0.0
    %354 = vmatprep.subr.mxu0 0.0
    %355 = vmatpush1.msra.mxu0 0.0
    %356 = vmatprep.subr.mxu0 0.0
    %357 = vmatpush1.msra.mxu0 0.0
    %358 = vmatprep.subr.mxu0 0.0
    %359 = vmatpush1.msra.mxu0 0.0
    %360 = vmatprep.subr.mxu0 0.0
    %361 = vmatpush1.msra.mxu0 0.0
    %362 = vmatprep.subr.mxu0 0.0
    %363 = vmatpush1.msra.mxu0 0.0
    %364 = vmatprep.subr.mxu0 0.0
    %365 = vmatpush1.msra.mxu0 0.0
    %366 = vmatprep.subr.mxu0 0.0
    %367 = vmatpush1.msra.mxu0 0.0
    %368 = vmatprep.subr.mxu0 0.0
    %369 = vmatpush1.msra.mxu0 0.0
    %370 = vmatprep.subr.mxu0 0.0
    %371 = vmatpush1.msra.mxu0 0.0
    %372 = vmatprep.subr.mxu0 0.0
    %373 = vmatpush1.msra.mxu0 0.0
    %374 = vmatprep.mubr.f32.mxu0 0.0
    %v375 = vand.u32 %v72, 4294901760
    %v376 = vsub.f32 %v72, %v375
    %v377 = vand.u32 %v376, 4294901760
    %378 = vmatmul.mubr.f32.gmra.mrb[0].mxu0 %v377
    %v379 = vpop.f32.mrb[0].mxu0
    %v380 = vadd.f32 %v305, %v379
    %v381 = vpop.f32.mrb[0].mxu0
    %382 = vdwg.mxu0
    %383 = vmatprep.subr.mxu0 0.0
    %v384 = vand.u32 %v61, 4294901760
    %v385 = vsub.f32 %v61, %v384
    %v386 = vand.u32 %v385, 4294901760
    %387 = vmatpush1.msra.mxu0 %v386
    %388 = vmatprep.subr.mxu0 0.0
    %v389 = vand.u32 %v62, 4294901760
    %v390 = vsub.f32 %v62, %v389
    %v391 = vand.u32 %v390, 4294901760
    %392 = vmatpush1.msra.mxu0 %v391
    %393 = vmatprep.subr.mxu0 0.0
    %394 = vmatpush1.msra.mxu0 0.0
    %395 = vmatprep.subr.mxu0 0.0
    %396 = vmatpush1.msra.mxu0 0.0
    %397 = vmatprep.subr.mxu0 0.0
    %398 = vmatpush1.msra.mxu0 0.0
    %399 = vmatprep.subr.mxu0 0.0
    %400 = vmatpush1.msra.mxu0 0.0
    %401 = vmatprep.subr.mxu0 0.0
    %402 = vmatpush1.msra.mxu0 0.0
    %403 = vmatprep.subr.mxu0 0.0
    %404 = vmatpush1.msra.mxu0 0.0
    %405 = vmatprep.subr.mxu0 0.0
    %406 = vmatpush1.msra.mxu0 0.0
    %407 = vmatprep.subr.mxu0 0.0
    %408 = vmatpush1.msra.mxu0 0.0
    %409 = vmatprep.subr.mxu0 0.0
    %410 = vmatpush1.msra.mxu0 0.0
    %411 = vmatprep.subr.mxu0 0.0
    %412 = vmatpush1.msra.mxu0 0.0
    %413 = vmatprep.subr.mxu0 0.0
    %414 = vmatpush1.msra.mxu0 0.0
    %415 = vmatprep.subr.mxu0 0.0
    %416 = vmatpush1.msra.mxu0 0.0
    %417 = vmatprep.subr.mxu0 0.0
    %418 = vmatpush1.msra.mxu0 0.0
    %419 = vmatprep.subr.mxu0 0.0
    %420 = vmatpush1.msra.mxu0 0.0
    %421 = vmatprep.subr.mxu0 0.0
    %422 = vmatpush1.msra.mxu0 0.0
    %423 = vmatprep.subr.mxu0 0.0
    %424 = vmatpush1.msra.mxu0 0.0
    %425 = vmatprep.subr.mxu0 0.0
    %426 = vmatpush1.msra.mxu0 0.0
    %427 = vmatprep.subr.mxu0 0.0
    %428 = vmatpush1.msra.mxu0 0.0
    %429 = vmatprep.subr.mxu0 0.0
    %430 = vmatpush1.msra.mxu0 0.0
    %431 = vmatprep.subr.mxu0 0.0
    %432 = vmatpush1.msra.mxu0 0.0
    %433 = vmatprep.subr.mxu0 0.0
    %434 = vmatpush1.msra.mxu0 0.0
    %435 = vmatprep.subr.mxu0 0.0
    %436 = vmatpush1.msra.mxu0 0.0
    %437 = vmatprep.subr.mxu0 0.0
    %438 = vmatpush1.msra.mxu0 0.0
    %439 = vmatprep.subr.mxu0 0.0
    %440 = vmatpush1.msra.mxu0 0.0
    %441 = vmatprep.subr.mxu0 0.0
    %442 = vmatpush1.msra.mxu0 0.0
    %443 = vmatprep.subr.mxu0 0.0
    %444 = vmatpush1.msra.mxu0 0.0
    %445 = vmatprep.subr.mxu0 0.0
    %446 = vmatpush1.msra.mxu0 0.0
    %447 = vmatprep.subr.mxu0 0.0
    %448 = vmatpush1.msra.mxu0 0.0
    %449 = vmatprep.subr.mxu0 0.0
    %450 = vmatpush1.msra.mxu0 0.0
    %451 = vmatprep.subr.mxu0 0.0
    %452 = vmatpush1.msra.mxu0 0.0
    %453 = vmatprep.mubr.f32.mxu0 0.0
    %v454 = vand.u32 %v72, 4294901760
    %455 = vmatmul.mubr.f32.gmra.mrb[0].mxu0 %v454
    %v456 = vpop.f32.mrb[0].mxu0
    %v457 = vadd.f32 %v380, %v456
    %v458 = vpop.f32.mrb[0].mxu0
    %459 = vdwg.mxu0
    %460 = vmatprep.subr.mxu0 0.0
    %v461 = vand.u32 %v61, 4294901760
    %462 = vmatpush1.msra.mxu0 %v461
    %463 = vmatprep.subr.mxu0 0.0
    %v464 = vand.u32 %v62, 4294901760
    %465 = vmatpush1.msra.mxu0 %v464
    %466 = vmatprep.subr.mxu0 0.0
    %467 = vmatpush1.msra.mxu0 0.0
    %468 = vmatprep.subr.mxu0 0.0
    %469 = vmatpush1.msra.mxu0 0.0
    %470 = vmatprep.subr.mxu0 0.0
    %471 = vmatpush1.msra.mxu0 0.0
    %472 = vmatprep.subr.mxu0 0.0
    %473 = vmatpush1.msra.mxu0 0.0
    %474 = vmatprep.subr.mxu0 0.0
    %475 = vmatpush1.msra.mxu0 0.0
    %476 = vmatprep.subr.mxu0 0.0
    %477 = vmatpush1.msra.mxu0 0.0
    %478 = vmatprep.subr.mxu0 0.0
    %479 = vmatpush1.msra.mxu0 0.0
    %480 = vmatprep.subr.mxu0 0.0
    %481 = vmatpush1.msra.mxu0 0.0
    %482 = vmatprep.subr.mxu0 0.0
    %483 = vmatpush1.msra.mxu0 0.0
    %484 = vmatprep.subr.mxu0 0.0
    %485 = vmatpush1.msra.mxu0 0.0
    %486 = vmatprep.subr.mxu0 0.0
    %487 = vmatpush1.msra.mxu0 0.0
    %488 = vmatprep.subr.mxu0 0.0
    %489 = vmatpush1.msra.mxu0 0.0
    %490 = vmatprep.subr.mxu0 0.0
    %491 = vmatpush1.msra.mxu0 0.0
    %492 = vmatprep.subr.mxu0 0.0
    %493 = vmatpush1.msra.mxu0 0.0
    %494 = vmatprep.subr.mxu0 0.0
    %495 = vmatpush1.msra.mxu0 0.0
    %496 = vmatprep.subr.mxu0 0.0
    %497 = vmatpush1.msra.mxu0 0.0
    %498 = vmatprep.subr.mxu0 0.0
    %499 = vmatpush1.msra.mxu0 0.0
    %500 = vmatprep.subr.mxu0 0.0
    %501 = vmatpush1.msra.mxu0 0.0
    %502 = vmatprep.subr.mxu0 0.0
    %503 = vmatpush1.msra.mxu0 0.0
    %504 = vmatprep.subr.mxu0 0.0
    %505 = vmatpush1.msra.mxu0 0.0
    %506 = vmatprep.subr.mxu0 0.0
    %507 = vmatpush1.msra.mxu0 0.0
    %508 = vmatprep.subr.mxu0 0.0
    %509 = vmatpush1.msra.mxu0 0.0
    %510 = vmatprep.subr.mxu0 0.0
    %511 = vmatpush1.msra.mxu0 0.0
    %512 = vmatprep.subr.mxu0 0.0
    %513 = vmatpush1.msra.mxu0 0.0
    %514 = vmatprep.subr.mxu0 0.0
    %515 = vmatpush1.msra.mxu0 0.0
    %516 = vmatprep.subr.mxu0 0.0
    %517 = vmatpush1.msra.mxu0 0.0
    %518 = vmatprep.subr.mxu0 0.0
    %519 = vmatpush1.msra.mxu0 0.0
    %520 = vmatprep.subr.mxu0 0.0
    %521 = vmatpush1.msra.mxu0 0.0
    %522 = vmatprep.subr.mxu0 0.0
    %523 = vmatpush1.msra.mxu0 0.0
    %524 = vmatprep.subr.mxu0 0.0
    %525 = vmatpush1.msra.mxu0 0.0
    %526 = vmatprep.mubr.f32.mxu0 0.0
    %v527 = vand.u32 %v72, 4294901760
    %528 = vmatmul.mubr.f32.gmra.mrb[0].mxu0 %v527
    %v529 = vpop.f32.mrb[0].mxu0
    %v530 = vadd.f32 %v457, %v529
    %v531 = vpop.f32.mrb[0].mxu0
    %532 = vdwg.mxu0
    %v533 = vmax.f32 %v530, 0.0
    %v534 = vld [vmem:[#allocation7] sm:$0xff]
    %v535 = vld [vmem:[#allocation7 + $0x8] sm:$0xff]
    %v536 = vld [vmem:[#allocation7 + $0x10] sm:$0xff]
    %v537 = vld [vmem:[#allocation7 + $0x18] sm:$0xff]
    %v538 = vld [vmem:[#allocation7 + $0x20] sm:$0xff]
    %v539 = vld [vmem:[#allocation7 + $0x28] sm:$0xff]
    %v540 = vld [vmem:[#allocation7 + $0x30] sm:$0xff]
    %v541 = vld [vmem:[#allocation7 + $0x38] sm:$0xff]
    %v542 = vld [vmem:[#allocation7 + $0x40] sm:$0xff]
    %v543 = vld [vmem:[#allocation7 + $0x48] sm:$0xff]
    %v544 = vld [vmem:[#allocation7 + $0x50] sm:$0xff]
    %v545 = vld [vmem:[#allocation7 + $0x58] sm:$0xff]
    %v546 = vld [vmem:[#allocation7 + $0x60] sm:$0xff]
    %v547 = vld [vmem:[#allocation7 + $0x68] sm:$0xff]
    %v548 = vld [vmem:[#allocation7 + $0x70] sm:$0xff]
    %v549 = vld [vmem:[#allocation7 + $0x78] sm:$0xff]
    %v550 = vld [vmem:[%s4] sm:$0x1]
    %v552 = vlaneseq
    %v553 = vshrl.u32 %v552, 7
    %v554 = vsub.s32 0, %v553
    %v555 = vrot.slane %v550, %v554
    %557 = vmatprep.subr.mxu0 0.0
    %v558 = vand.u32 %v534, 4294901760
    %559 = vmatpush1.msra.mxu0 %v558
    %560 = vmatprep.subr.mxu0 0.0
    %v561 = vand.u32 %v535, 4294901760
    %562 = vmatpush1.msra.mxu0 %v561
    %563 = vmatprep.subr.mxu0 0.0
    %v564 = vand.u32 %v536, 4294901760
    %565 = vmatpush1.msra.mxu0 %v564
    %566 = vmatprep.subr.mxu0 0.0
    %v567 = vand.u32 %v537, 4294901760
    %568 = vmatpush1.msra.mxu0 %v567
    %569 = vmatprep.subr.mxu0 0.0
    %v570 = vand.u32 %v538, 4294901760
    %571 = vmatpush1.msra.mxu0 %v570
    %572 = vmatprep.subr.mxu0 0.0
    %v573 = vand.u32 %v539, 4294901760
    %574 = vmatpush1.msra.mxu0 %v573
    %575 = vmatprep.subr.mxu0 0.0
    %v576 = vand.u32 %v540, 4294901760
    %577 = vmatpush1.msra.mxu0 %v576
    %578 = vmatprep.subr.mxu0 0.0
    %v579 = vand.u32 %v541, 4294901760
    %580 = vmatpush1.msra.mxu0 %v579
    %581 = vmatprep.subr.mxu0 0.0
    %v582 = vand.u32 %v542, 4294901760
    %583 = vmatpush1.msra.mxu0 %v582
    %584 = vmatprep.subr.mxu0 0.0
    %v585 = vand.u32 %v543, 4294901760
    %586 = vmatpush1.msra.mxu0 %v585
    %587 = vmatprep.subr.mxu0 0.0
    %v588 = vand.u32 %v544, 4294901760
    %589 = vmatpush1.msra.mxu0 %v588
    %590 = vmatprep.subr.mxu0 0.0
    %v591 = vand.u32 %v545, 4294901760
    %592 = vmatpush1.msra.mxu0 %v591
    %593 = vmatprep.subr.mxu0 0.0
    %v594 = vand.u32 %v546, 4294901760
    %595 = vmatpush1.msra.mxu0 %v594
    %596 = vmatprep.subr.mxu0 0.0
    %v597 = vand.u32 %v547, 4294901760
    %598 = vmatpush1.msra.mxu0 %v597
    %599 = vmatprep.subr.mxu0 0.0
    %v600 = vand.u32 %v548, 4294901760
    %601 = vmatpush1.msra.mxu0 %v600
    %602 = vmatprep.subr.mxu0 0.0
    %v603 = vand.u32 %v549, 4294901760
    %604 = vmatpush1.msra.mxu0 %v603
    %605 = vmatprep.subr.mxu0 0.0
    %606 = vmatpush1.msra.mxu0 0.0
    %607 = vmatprep.subr.mxu0 0.0
    %608 = vmatpush1.msra.mxu0 0.0
    %609 = vmatprep.subr.mxu0 0.0
    %610 = vmatpush1.msra.mxu0 0.0
    %611 = vmatprep.subr.mxu0 0.0
    %612 = vmatpush1.msra.mxu0 0.0
    %613 = vmatprep.subr.mxu0 0.0
    %614 = vmatpush1.msra.mxu0 0.0
    %615 = vmatprep.subr.mxu0 0.0
    %616 = vmatpush1.msra.mxu0 0.0
    %617 = vmatprep.subr.mxu0 0.0
    %618 = vmatpush1.msra.mxu0 0.0
    %619 = vmatprep.subr.mxu0 0.0
    %620 = vmatpush1.msra.mxu0 0.0
    %621 = vmatprep.subr.mxu0 0.0
    %622 = vmatpush1.msra.mxu0 0.0
    %623 = vmatprep.subr.mxu0 0.0
    %624 = vmatpush1.msra.mxu0 0.0
    %625 = vmatprep.subr.mxu0 0.0
    %626 = vmatpush1.msra.mxu0 0.0
    %627 = vmatprep.subr.mxu0 0.0
    %628 = vmatpush1.msra.mxu0 0.0
    %629 = vmatprep.subr.mxu0 0.0
    %630 = vmatpush1.msra.mxu0 0.0
    %631 = vmatprep.subr.mxu0 0.0
    %632 = vmatpush1.msra.mxu0 0.0
    %633 = vmatprep.subr.mxu0 0.0
    %634 = vmatpush1.msra.mxu0 0.0
    %635 = vmatprep.subr.mxu0 0.0
    %636 = vmatpush1.msra.mxu0 0.0
    %637 = vmatprep.mubr.f32.mxu0 0.0
    %v638 = vand.u32 %v533, 4294901760
    %v639 = vsub.f32 %v533, %v638
    %v640 = vand.u32 %v639, 4294901760
    %v641 = vsub.f32 %v639, %v640
    %v642 = vand.u32 %v641, 4294901760
    %643 = vmatmul.mubr.f32.gmra.mrb[0].mxu0 %v642
    %v644 = vpop.f32.mrb[0].mxu0
    %v645 = vadd.f32 %v555, %v644
    %v646 = vpop.f32.mrb[0].mxu0
    %647 = vdwg.mxu0
    %648 = vmatprep.subr.mxu0 0.0
    %v649 = vand.u32 %v534, 4294901760
    %v650 = vsub.f32 %v534, %v649
    %v651 = vand.u32 %v650, 4294901760
    %v652 = vsub.f32 %v650, %v651
    %v653 = vand.u32 %v652, 4294901760
    %654 = vmatpush1.msra.mxu0 %v653
    %655 = vmatprep.subr.mxu0 0.0
    %v656 = vand.u32 %v535, 4294901760
    %v657 = vsub.f32 %v535, %v656
    %v658 = vand.u32 %v657, 4294901760
    %v659 = vsub.f32 %v657, %v658
    %v660 = vand.u32 %v659, 4294901760
    %661 = vmatpush1.msra.mxu0 %v660
    %662 = vmatprep.subr.mxu0 0.0
    %v663 = vand.u32 %v536, 4294901760
    %v664 = vsub.f32 %v536, %v663
    %v665 = vand.u32 %v664, 4294901760
    %v666 = vsub.f32 %v664, %v665
    %v667 = vand.u32 %v666, 4294901760
    %668 = vmatpush1.msra.mxu0 %v667
    %669 = vmatprep.subr.mxu0 0.0
    %v670 = vand.u32 %v537, 4294901760
    %v671 = vsub.f32 %v537, %v670
    %v672 = vand.u32 %v671, 4294901760
    %v673 = vsub.f32 %v671, %v672
    %v674 = vand.u32 %v673, 4294901760
    %675 = vmatpush1.msra.mxu0 %v674
    %676 = vmatprep.subr.mxu0 0.0
    %v677 = vand.u32 %v538, 4294901760
    %v678 = vsub.f32 %v538, %v677
    %v679 = vand.u32 %v678, 4294901760
    %v680 = vsub.f32 %v678, %v679
    %v681 = vand.u32 %v680, 4294901760
    %682 = vmatpush1.msra.mxu0 %v681
    %683 = vmatprep.subr.mxu0 0.0
    %v684 = vand.u32 %v539, 4294901760
    %v685 = vsub.f32 %v539, %v684
    %v686 = vand.u32 %v685, 4294901760
    %v687 = vsub.f32 %v685, %v686
    %v688 = vand.u32 %v687, 4294901760
    %689 = vmatpush1.msra.mxu0 %v688
    %690 = vmatprep.subr.mxu0 0.0
    %v691 = vand.u32 %v540, 4294901760
    %v692 = vsub.f32 %v540, %v691
    %v693 = vand.u32 %v692, 4294901760
    %v694 = vsub.f32 %v692, %v693
    %v695 = vand.u32 %v694, 4294901760
    %696 = vmatpush1.msra.mxu0 %v695
    %697 = vmatprep.subr.mxu0 0.0
    %v698 = vand.u32 %v541, 4294901760
    %v699 = vsub.f32 %v541, %v698
    %v700 = vand.u32 %v699, 4294901760
    %v701 = vsub.f32 %v699, %v700
    %v702 = vand.u32 %v701, 4294901760
    %703 = vmatpush1.msra.mxu0 %v702
    %704 = vmatprep.subr.mxu0 0.0
    %v705 = vand.u32 %v542, 4294901760
    %v706 = vsub.f32 %v542, %v705
    %v707 = vand.u32 %v706, 4294901760
    %v708 = vsub.f32 %v706, %v707
    %v709 = vand.u32 %v708, 4294901760
    %710 = vmatpush1.msra.mxu0 %v709
    %711 = vmatprep.subr.mxu0 0.0
    %v712 = vand.u32 %v543, 4294901760
    %v713 = vsub.f32 %v543, %v712
    %v714 = vand.u32 %v713, 4294901760
    %v715 = vsub.f32 %v713, %v714
    %v716 = vand.u32 %v715, 4294901760
    %717 = vmatpush1.msra.mxu0 %v716
    %718 = vmatprep.subr.mxu0 0.0
    %v719 = vand.u32 %v544, 4294901760
    %v720 = vsub.f32 %v544, %v719
    %v721 = vand.u32 %v720, 4294901760
    %v722 = vsub.f32 %v720, %v721
    %v723 = vand.u32 %v722, 4294901760
    %724 = vmatpush1.msra.mxu0 %v723
    %725 = vmatprep.subr.mxu0 0.0
    %v726 = vand.u32 %v545, 4294901760
    %v727 = vsub.f32 %v545, %v726
    %v728 = vand.u32 %v727, 4294901760
    %v729 = vsub.f32 %v727, %v728
    %v730 = vand.u32 %v729, 4294901760
    %731 = vmatpush1.msra.mxu0 %v730
    %732 = vmatprep.subr.mxu0 0.0
    %v733 = vand.u32 %v546, 4294901760
    %v734 = vsub.f32 %v546, %v733
    %v735 = vand.u32 %v734, 4294901760
    %v736 = vsub.f32 %v734, %v735
    %v737 = vand.u32 %v736, 4294901760
    %738 = vmatpush1.msra.mxu0 %v737
    %739 = vmatprep.subr.mxu0 0.0
    %v740 = vand.u32 %v547, 4294901760
    %v741 = vsub.f32 %v547, %v740
    %v742 = vand.u32 %v741, 4294901760
    %v743 = vsub.f32 %v741, %v742
    %v744 = vand.u32 %v743, 4294901760
    %745 = vmatpush1.msra.mxu0 %v744
    %746 = vmatprep.subr.mxu0 0.0
    %v747 = vand.u32 %v548, 4294901760
    %v748 = vsub.f32 %v548, %v747
    %v749 = vand.u32 %v748, 4294901760
    %v750 = vsub.f32 %v748, %v749
    %v751 = vand.u32 %v750, 4294901760
    %752 = vmatpush1.msra.mxu0 %v751
    %753 = vmatprep.subr.mxu0 0.0
    %v754 = vand.u32 %v549, 4294901760
    %v755 = vsub.f32 %v549, %v754
    %v756 = vand.u32 %v755, 4294901760
    %v757 = vsub.f32 %v755, %v756
    %v758 = vand.u32 %v757, 4294901760
    %759 = vmatpush1.msra.mxu0 %v758
    %760 = vmatprep.subr.mxu0 0.0
    %761 = vmatpush1.msra.mxu0 0.0
    %762 = vmatprep.subr.mxu0 0.0
    %763 = vmatpush1.msra.mxu0 0.0
    %764 = vmatprep.subr.mxu0 0.0
    %765 = vmatpush1.msra.mxu0 0.0
    %766 = vmatprep.subr.mxu0 0.0
    %767 = vmatpush1.msra.mxu0 0.0
    %768 = vmatprep.subr.mxu0 0.0
    %769 = vmatpush1.msra.mxu0 0.0
    %770 = vmatprep.subr.mxu0 0.0
    %771 = vmatpush1.msra.mxu0 0.0
    %772 = vmatprep.subr.mxu0 0.0
    %773 = vmatpush1.msra.mxu0 0.0
    %774 = vmatprep.subr.mxu0 0.0
    %775 = vmatpush1.msra.mxu0 0.0
    %776 = vmatprep.subr.mxu0 0.0
    %777 = vmatpush1.msra.mxu0 0.0
    %778 = vmatprep.subr.mxu0 0.0
    %779 = vmatpush1.msra.mxu0 0.0
    %780 = vmatprep.subr.mxu0 0.0
    %781 = vmatpush1.msra.mxu0 0.0
    %782 = vmatprep.subr.mxu0 0.0
    %783 = vmatpush1.msra.mxu0 0.0
    %784 = vmatprep.subr.mxu0 0.0
    %785 = vmatpush1.msra.mxu0 0.0
    %786 = vmatprep.subr.mxu0 0.0
    %787 = vmatpush1.msra.mxu0 0.0
    %788 = vmatprep.subr.mxu0 0.0
    %789 = vmatpush1.msra.mxu0 0.0
    %790 = vmatprep.subr.mxu0 0.0
    %791 = vmatpush1.msra.mxu0 0.0
    %792 = vmatprep.mubr.f32.mxu0 0.0
    %v793 = vand.u32 %v533, 4294901760
    %794 = vmatmul.mubr.f32.gmra.mrb[0].mxu0 %v793
    %v795 = vpop.f32.mrb[0].mxu0
    %v796 = vadd.f32 %v645, %v795
    %v797 = vpop.f32.mrb[0].mxu0
    %798 = vdwg.mxu0
    %799 = vmatprep.subr.mxu0 0.0
    %v800 = vand.u32 %v534, 4294901760
    %v801 = vsub.f32 %v534, %v800
    %802 = vmatpush1.msra.mxu0 %v801
    %803 = vmatprep.subr.mxu0 0.0
    %v804 = vand.u32 %v535, 4294901760
    %v805 = vsub.f32 %v535, %v804
    %806 = vmatpush1.msra.mxu0 %v805
    %807 = vmatprep.subr.mxu0 0.0
    %v808 = vand.u32 %v536, 4294901760
    %v809 = vsub.f32 %v536, %v808
    %810 = vmatpush1.msra.mxu0 %v809
    %811 = vmatprep.subr.mxu0 0.0
    %v812 = vand.u32 %v537, 4294901760
    %v813 = vsub.f32 %v537, %v812
    %814 = vmatpush1.msra.mxu0 %v813
    %815 = vmatprep.subr.mxu0 0.0
    %v816 = vand.u32 %v538, 4294901760
    %v817 = vsub.f32 %v538, %v816
    %818 = vmatpush1.msra.mxu0 %v817
    %819 = vmatprep.subr.mxu0 0.0
    %v820 = vand.u32 %v539, 4294901760
    %v821 = vsub.f32 %v539, %v820
    %822 = vmatpush1.msra.mxu0 %v821
    %823 = vmatprep.subr.mxu0 0.0
    %v824 = vand.u32 %v540, 4294901760
    %v825 = vsub.f32 %v540, %v824
    %826 = vmatpush1.msra.mxu0 %v825
    %827 = vmatprep.subr.mxu0 0.0
    %v828 = vand.u32 %v541, 4294901760
    %v829 = vsub.f32 %v541, %v828
    %830 = vmatpush1.msra.mxu0 %v829
    %831 = vmatprep.subr.mxu0 0.0
    %v832 = vand.u32 %v542, 4294901760
    %v833 = vsub.f32 %v542, %v832
    %834 = vmatpush1.msra.mxu0 %v833
    %835 = vmatprep.subr.mxu0 0.0
    %v836 = vand.u32 %v543, 4294901760
    %v837 = vsub.f32 %v543, %v836
    %838 = vmatpush1.msra.mxu0 %v837
    %839 = vmatprep.subr.mxu0 0.0
    %v840 = vand.u32 %v544, 4294901760
    %v841 = vsub.f32 %v544, %v840
    %842 = vmatpush1.msra.mxu0 %v841
    %843 = vmatprep.subr.mxu0 0.0
    %v844 = vand.u32 %v545, 4294901760
    %v845 = vsub.f32 %v545, %v844
    %846 = vmatpush1.msra.mxu0 %v845
    %847 = vmatprep.subr.mxu0 0.0
    %v848 = vand.u32 %v546, 4294901760
    %v849 = vsub.f32 %v546, %v848
    %850 = vmatpush1.msra.mxu0 %v849
    %851 = vmatprep.subr.mxu0 0.0
    %v852 = vand.u32 %v547, 4294901760
    %v853 = vsub.f32 %v547, %v852
    %854 = vmatpush1.msra.mxu0 %v853
    %855 = vmatprep.subr.mxu0 0.0
    %v856 = vand.u32 %v548, 4294901760
    %v857 = vsub.f32 %v548, %v856
    %858 = vmatpush1.msra.mxu0 %v857
    %859 = vmatprep.subr.mxu0 0.0
    %v860 = vand.u32 %v549, 4294901760
    %v861 = vsub.f32 %v549, %v860
    %862 = vmatpush1.msra.mxu0 %v861
    %863 = vmatprep.subr.mxu0 0.0
    %864 = vmatpush1.msra.mxu0 0.0
    %865 = vmatprep.subr.mxu0 0.0
    %866 = vmatpush1.msra.mxu0 0.0
    %867 = vmatprep.subr.mxu0 0.0
    %868 = vmatpush1.msra.mxu0 0.0
    %869 = vmatprep.subr.mxu0 0.0
    %870 = vmatpush1.msra.mxu0 0.0
    %871 = vmatprep.subr.mxu0 0.0
    %872 = vmatpush1.msra.mxu0 0.0
    %873 = vmatprep.subr.mxu0 0.0
    %874 = vmatpush1.msra.mxu0 0.0
    %875 = vmatprep.subr.mxu0 0.0
    %876 = vmatpush1.msra.mxu0 0.0
    %877 = vmatprep.subr.mxu0 0.0
    %878 = vmatpush1.msra.mxu0 0.0
    %879 = vmatprep.subr.mxu0 0.0
    %880 = vmatpush1.msra.mxu0 0.0
    %881 = vmatprep.subr.mxu0 0.0
    %882 = vmatpush1.msra.mxu0 0.0
    %883 = vmatprep.subr.mxu0 0.0
    %884 = vmatpush1.msra.mxu0 0.0
    %885 = vmatprep.subr.mxu0 0.0
    %886 = vmatpush1.msra.mxu0 0.0
    %887 = vmatprep.subr.mxu0 0.0
    %888 = vmatpush1.msra.mxu0 0.0
    %889 = vmatprep.subr.mxu0 0.0
    %890 = vmatpush1.msra.mxu0 0.0
    %891 = vmatprep.subr.mxu0 0.0
    %892 = vmatpush1.msra.mxu0 0.0
    %893 = vmatprep.subr.mxu0 0.0
    %894 = vmatpush1.msra.mxu0 0.0
    %895 = vmatprep.mubr.f32.mxu0 0.0
    %v896 = vand.u32 %v533, 4294901760
    %v897 = vsub.f32 %v533, %v896
    %898 = vmatmul.mubr.f32.gmra.mrb[0].mxu0 %v897
    %v899 = vpop.f32.mrb[0].mxu0
    %v900 = vadd.f32 %v796, %v899
    %v901 = vpop.f32.mrb[0].mxu0
    %902 = vdwg.mxu0
    %903 = vmatprep.subr.mxu0 0.0
    %v904 = vand.u32 %v534, 4294901760
    %905 = vmatpush1.msra.mxu0 %v904
    %906 = vmatprep.subr.mxu0 0.0
    %v907 = vand.u32 %v535, 4294901760
    %908 = vmatpush1.msra.mxu0 %v907
    %909 = vmatprep.subr.mxu0 0.0
    %v910 = vand.u32 %v536, 4294901760
    %911 = vmatpush1.msra.mxu0 %v910
    %912 = vmatprep.subr.mxu0 0.0
    %v913 = vand.u32 %v537, 4294901760
    %914 = vmatpush1.msra.mxu0 %v913
    %915 = vmatprep.subr.mxu0 0.0
    %v916 = vand.u32 %v538, 4294901760
    %917 = vmatpush1.msra.mxu0 %v916
    %918 = vmatprep.subr.mxu0 0.0
    %v919 = vand.u32 %v539, 4294901760
    %920 = vmatpush1.msra.mxu0 %v919
    %921 = vmatprep.subr.mxu0 0.0
    %v922 = vand.u32 %v540, 4294901760
    %923 = vmatpush1.msra.mxu0 %v922
    %924 = vmatprep.subr.mxu0 0.0
    %v925 = vand.u32 %v541, 4294901760
    %926 = vmatpush1.msra.mxu0 %v925
    %927 = vmatprep.subr.mxu0 0.0
    %v928 = vand.u32 %v542, 4294901760
    %929 = vmatpush1.msra.mxu0 %v928
    %930 = vmatprep.subr.mxu0 0.0
    %v931 = vand.u32 %v543, 4294901760
    %932 = vmatpush1.msra.mxu0 %v931
    %933 = vmatprep.subr.mxu0 0.0
    %v934 = vand.u32 %v544, 4294901760
    %935 = vmatpush1.msra.mxu0 %v934
    %936 = vmatprep.subr.mxu0 0.0
    %v937 = vand.u32 %v545, 4294901760
    %938 = vmatpush1.msra.mxu0 %v937
    %939 = vmatprep.subr.mxu0 0.0
    %v940 = vand.u32 %v546, 4294901760
    %941 = vmatpush1.msra.mxu0 %v940
    %942 = vmatprep.subr.mxu0 0.0
    %v943 = vand.u32 %v547, 4294901760
    %944 = vmatpush1.msra.mxu0 %v943
    %945 = vmatprep.subr.mxu0 0.0
    %v946 = vand.u32 %v548, 4294901760
    %947 = vmatpush1.msra.mxu0 %v946
    %948 = vmatprep.subr.mxu0 0.0
    %v949 = vand.u32 %v549, 4294901760
    %950 = vmatpush1.msra.mxu0 %v949
    %951 = vmatprep.subr.mxu0 0.0
    %952 = vmatpush1.msra.mxu0 0.0
    %953 = vmatprep.subr.mxu0 0.0
    %954 = vmatpush1.msra.mxu0 0.0
    %955 = vmatprep.subr.mxu0 0.0
    %956 = vmatpush1.msra.mxu0 0.0
    %957 = vmatprep.subr.mxu0 0.0
    %958 = vmatpush1.msra.mxu0 0.0
    %959 = vmatprep.subr.mxu0 0.0
    %960 = vmatpush1.msra.mxu0 0.0
    %961 = vmatprep.subr.mxu0 0.0
    %962 = vmatpush1.msra.mxu0 0.0
    %963 = vmatprep.subr.mxu0 0.0
    %964 = vmatpush1.msra.mxu0 0.0
    %965 = vmatprep.subr.mxu0 0.0
    %966 = vmatpush1.msra.mxu0 0.0
    %967 = vmatprep.subr.mxu0 0.0
    %968 = vmatpush1.msra.mxu0 0.0
    %969 = vmatprep.subr.mxu0 0.0
    %970 = vmatpush1.msra.mxu0 0.0
    %971 = vmatprep.subr.mxu0 0.0
    %972 = vmatpush1.msra.mxu0 0.0
    %973 = vmatprep.subr.mxu0 0.0
    %974 = vmatpush1.msra.mxu0 0.0
    %975 = vmatprep.subr.mxu0 0.0
    %976 = vmatpush1.msra.mxu0 0.0
    %977 = vmatprep.subr.mxu0 0.0
    %978 = vmatpush1.msra.mxu0 0.0
    %979 = vmatprep.subr.mxu0 0.0
    %980 = vmatpush1.msra.mxu0 0.0
    %981 = vmatprep.subr.mxu0 0.0
    %982 = vmatpush1.msra.mxu0 0.0
    %983 = vmatprep.mubr.f32.mxu0 0.0
    %v984 = vand.u32 %v533, 4294901760
    %v985 = vsub.f32 %v533, %v984
    %v986 = vand.u32 %v985, 4294901760
    %987 = vmatmul.mubr.f32.gmra.mrb[0].mxu0 %v986
    %v988 = vpop.f32.mrb[0].mxu0
    %v989 = vadd.f32 %v900, %v988
    %v990 = vpop.f32.mrb[0].mxu0
    %991 = vdwg.mxu0
    %992 = vmatprep.subr.mxu0 0.0
    %v993 = vand.u32 %v534, 4294901760
    %v994 = vsub.f32 %v534, %v993
    %v995 = vand.u32 %v994, 4294901760
    %996 = vmatpush1.msra.mxu0 %v995
    %997 = vmatprep.subr.mxu0 0.0
    %v998 = vand.u32 %v535, 4294901760
    %v999 = vsub.f32 %v535, %v998
    %v1000 = vand.u32 %v999, 4294901760
    %1001 = vmatpush1.msra.mxu0 %v1000
    %1002 = vmatprep.subr.mxu0 0.0
    %v1003 = vand.u32 %v536, 4294901760
    %v1004 = vsub.f32 %v536, %v1003
    %v1005 = vand.u32 %v1004, 4294901760
    %1006 = vmatpush1.msra.mxu0 %v1005
    %1007 = vmatprep.subr.mxu0 0.0
    %v1008 = vand.u32 %v537, 4294901760
    %v1009 = vsub.f32 %v537, %v1008
    %v1010 = vand.u32 %v1009, 4294901760
    %1011 = vmatpush1.msra.mxu0 %v1010
    %1012 = vmatprep.subr.mxu0 0.0
    %v1013 = vand.u32 %v538, 4294901760
    %v1014 = vsub.f32 %v538, %v1013
    %v1015 = vand.u32 %v1014, 4294901760
    %1016 = vmatpush1.msra.mxu0 %v1015
    %1017 = vmatprep.subr.mxu0 0.0
    %v1018 = vand.u32 %v539, 4294901760
    %v1019 = vsub.f32 %v539, %v1018
    %v1020 = vand.u32 %v1019, 4294901760
    %1021 = vmatpush1.msra.mxu0 %v1020
    %1022 = vmatprep.subr.mxu0 0.0
    %v1023 = vand.u32 %v540, 4294901760
    %v1024 = vsub.f32 %v540, %v1023
    %v1025 = vand.u32 %v1024, 4294901760
    %1026 = vmatpush1.msra.mxu0 %v1025
    %1027 = vmatprep.subr.mxu0 0.0
    %v1028 = vand.u32 %v541, 4294901760
    %v1029 = vsub.f32 %v541, %v1028
    %v1030 = vand.u32 %v1029, 4294901760
    %1031 = vmatpush1.msra.mxu0 %v1030
    %1032 = vmatprep.subr.mxu0 0.0
    %v1033 = vand.u32 %v542, 4294901760
    %v1034 = vsub.f32 %v542, %v1033
    %v1035 = vand.u32 %v1034, 4294901760
    %1036 = vmatpush1.msra.mxu0 %v1035
    %1037 = vmatprep.subr.mxu0 0.0
    %v1038 = vand.u32 %v543, 4294901760
    %v1039 = vsub.f32 %v543, %v1038
    %v1040 = vand.u32 %v1039, 4294901760
    %1041 = vmatpush1.msra.mxu0 %v1040
    %1042 = vmatprep.subr.mxu0 0.0
    %v1043 = vand.u32 %v544, 4294901760
    %v1044 = vsub.f32 %v544, %v1043
    %v1045 = vand.u32 %v1044, 4294901760
    %1046 = vmatpush1.msra.mxu0 %v1045
    %1047 = vmatprep.subr.mxu0 0.0
    %v1048 = vand.u32 %v545, 4294901760
    %v1049 = vsub.f32 %v545, %v1048
    %v1050 = vand.u32 %v1049, 4294901760
    %1051 = vmatpush1.msra.mxu0 %v1050
    %1052 = vmatprep.subr.mxu0 0.0
    %v1053 = vand.u32 %v546, 4294901760
    %v1054 = vsub.f32 %v546, %v1053
    %v1055 = vand.u32 %v1054, 4294901760
    %1056 = vmatpush1.msra.mxu0 %v1055
    %1057 = vmatprep.subr.mxu0 0.0
    %v1058 = vand.u32 %v547, 4294901760
    %v1059 = vsub.f32 %v547, %v1058
    %v1060 = vand.u32 %v1059, 4294901760
    %1061 = vmatpush1.msra.mxu0 %v1060
    %1062 = vmatprep.subr.mxu0 0.0
    %v1063 = vand.u32 %v548, 4294901760
    %v1064 = vsub.f32 %v548, %v1063
    %v1065 = vand.u32 %v1064, 4294901760
    %1066 = vmatpush1.msra.mxu0 %v1065
    %1067 = vmatprep.subr.mxu0 0.0
    %v1068 = vand.u32 %v549, 4294901760
    %v1069 = vsub.f32 %v549, %v1068
    %v1070 = vand.u32 %v1069, 4294901760
    %1071 = vmatpush1.msra.mxu0 %v1070
    %1072 = vmatprep.subr.mxu0 0.0
    %1073 = vmatpush1.msra.mxu0 0.0
    %1074 = vmatprep.subr.mxu0 0.0
    %1075 = vmatpush1.msra.mxu0 0.0
    %1076 = vmatprep.subr.mxu0 0.0
    %1077 = vmatpush1.msra.mxu0 0.0
    %1078 = vmatprep.subr.mxu0 0.0
    %1079 = vmatpush1.msra.mxu0 0.0
    %1080 = vmatprep.subr.mxu0 0.0
    %1081 = vmatpush1.msra.mxu0 0.0
    %1082 = vmatprep.subr.mxu0 0.0
    %1083 = vmatpush1.msra.mxu0 0.0
    %1084 = vmatprep.subr.mxu0 0.0
    %1085 = vmatpush1.msra.mxu0 0.0
    %1086 = vmatprep.subr.mxu0 0.0
    %1087 = vmatpush1.msra.mxu0 0.0
    %1088 = vmatprep.subr.mxu0 0.0
    %1089 = vmatpush1.msra.mxu0 0.0
    %1090 = vmatprep.subr.mxu0 0.0
    %1091 = vmatpush1.msra.mxu0 0.0
    %1092 = vmatprep.subr.mxu0 0.0
    %1093 = vmatpush1.msra.mxu0 0.0
    %1094 = vmatprep.subr.mxu0 0.0
    %1095 = vmatpush1.msra.mxu0 0.0
    %1096 = vmatprep.subr.mxu0 0.0
    %1097 = vmatpush1.msra.mxu0 0.0
    %1098 = vmatprep.subr.mxu0 0.0
    %1099 = vmatpush1.msra.mxu0 0.0
    %1100 = vmatprep.subr.mxu0 0.0
    %1101 = vmatpush1.msra.mxu0 0.0
    %1102 = vmatprep.subr.mxu0 0.0
    %1103 = vmatpush1.msra.mxu0 0.0
    %1104 = vmatprep.mubr.f32.mxu0 0.0
    %v1105 = vand.u32 %v533, 4294901760
    %1106 = vmatmul.mubr.f32.gmra.mrb[0].mxu0 %v1105
    %v1107 = vpop.f32.mrb[0].mxu0
    %v1108 = vadd.f32 %v989, %v1107
    %v1109 = vpop.f32.mrb[0].mxu0
    %1110 = vdwg.mxu0
    %1111 = vmatprep.subr.mxu0 0.0
    %v1112 = vand.u32 %v534, 4294901760
    %1113 = vmatpush1.msra.mxu0 %v1112
    %1114 = vmatprep.subr.mxu0 0.0
    %v1115 = vand.u32 %v535, 4294901760
    %1116 = vmatpush1.msra.mxu0 %v1115
    %1117 = vmatprep.subr.mxu0 0.0
    %v1118 = vand.u32 %v536, 4294901760
    %1119 = vmatpush1.msra.mxu0 %v1118
    %1120 = vmatprep.subr.mxu0 0.0
    %v1121 = vand.u32 %v537, 4294901760
    %1122 = vmatpush1.msra.mxu0 %v1121
    %1123 = vmatprep.subr.mxu0 0.0
    %v1124 = vand.u32 %v538, 4294901760
    %1125 = vmatpush1.msra.mxu0 %v1124
    %1126 = vmatprep.subr.mxu0 0.0
    %v1127 = vand.u32 %v539, 4294901760
    %1128 = vmatpush1.msra.mxu0 %v1127
    %1129 = vmatprep.subr.mxu0 0.0
    %v1130 = vand.u32 %v540, 4294901760
    %1131 = vmatpush1.msra.mxu0 %v1130
    %1132 = vmatprep.subr.mxu0 0.0
    %v1133 = vand.u32 %v541, 4294901760
    %1134 = vmatpush1.msra.mxu0 %v1133
    %1135 = vmatprep.subr.mxu0 0.0
    %v1136 = vand.u32 %v542, 4294901760
    %1137 = vmatpush1.msra.mxu0 %v1136
    %1138 = vmatprep.subr.mxu0 0.0
    %v1139 = vand.u32 %v543, 4294901760
    %1140 = vmatpush1.msra.mxu0 %v1139
    %1141 = vmatprep.subr.mxu0 0.0
    %v1142 = vand.u32 %v544, 4294901760
    %1143 = vmatpush1.msra.mxu0 %v1142
    %1144 = vmatprep.subr.mxu0 0.0
    %v1145 = vand.u32 %v545, 4294901760
    %1146 = vmatpush1.msra.mxu0 %v1145
    %1147 = vmatprep.subr.mxu0 0.0
    %v1148 = vand.u32 %v546, 4294901760
    %1149 = vmatpush1.msra.mxu0 %v1148
    %1150 = vmatprep.subr.mxu0 0.0
    %v1151 = vand.u32 %v547, 4294901760
    %1152 = vmatpush1.msra.mxu0 %v1151
    %1153 = vmatprep.subr.mxu0 0.0
    %v1154 = vand.u32 %v548, 4294901760
    %1155 = vmatpush1.msra.mxu0 %v1154
    %1156 = vmatprep.subr.mxu0 0.0
    %v1157 = vand.u32 %v549, 4294901760
    %1158 = vmatpush1.msra.mxu0 %v1157
    %1159 = vmatprep.subr.mxu0 0.0
    %1160 = vmatpush1.msra.mxu0 0.0
    %1161 = vmatprep.subr.mxu0 0.0
    %1162 = vmatpush1.msra.mxu0 0.0
    %1163 = vmatprep.subr.mxu0 0.0
    %1164 = vmatpush1.msra.mxu0 0.0
    %1165 = vmatprep.subr.mxu0 0.0
    %1166 = vmatpush1.msra.mxu0 0.0
    %1167 = vmatprep.subr.mxu0 0.0
    %1168 = vmatpush1.msra.mxu0 0.0
    %1169 = vmatprep.subr.mxu0 0.0
    %1170 = vmatpush1.msra.mxu0 0.0
    %1171 = vmatprep.subr.mxu0 0.0
    %1172 = vmatpush1.msra.mxu0 0.0
    %1173 = vmatprep.subr.mxu0 0.0
    %1174 = vmatpush1.msra.mxu0 0.0
    %1175 = vmatprep.subr.mxu0 0.0
    %1176 = vmatpush1.msra.mxu0 0.0
    %1177 = vmatprep.subr.mxu0 0.0
    %1178 = vmatpush1.msra.mxu0 0.0
    %1179 = vmatprep.subr.mxu0 0.0
    %1180 = vmatpush1.msra.mxu0 0.0
    %1181 = vmatprep.subr.mxu0 0.0
    %1182 = vmatpush1.msra.mxu0 0.0
    %1183 = vmatprep.subr.mxu0 0.0
    %1184 = vmatpush1.msra.mxu0 0.0
    %1185 = vmatprep.subr.mxu0 0.0
    %1186 = vmatpush1.msra.mxu0 0.0
    %1187 = vmatprep.subr.mxu0 0.0
    %1188 = vmatpush1.msra.mxu0 0.0
    %1189 = vmatprep.subr.mxu0 0.0
    %1190 = vmatpush1.msra.mxu0 0.0
    %1191 = vmatprep.mubr.f32.mxu0 0.0
    %v1192 = vand.u32 %v533, 4294901760
    %1193 = vmatmul.mubr.f32.gmra.mrb[0].mxu0 %v1192
    %v1194 = vpop.f32.mrb[0].mxu0
    %v1195 = vadd.f32 %v1108, %v1194
    %v1196 = vpop.f32.mrb[0].mxu0
    %1197 = vdwg.mxu0
    %vm1198 = vcmask 64512
    %1199 = vst.msk [vmem:[#allocation8] sm:$0xff] %vm1198, %v1195
    // Predicated region
    $region34: #{_lambda_.1} parent=1 // pred_check
      _
    $region35: #{_lambda_.1} parent=1 // pred_check_branch
      %1201 = sbr.rel (0) target = $region37
    $region36: #{_lambda_.1} parent=1 // pred_region
      %s1203 = ssub.s32 128, 128
      %1204 = vsyncadd [#allocation4], %s1203
      %s1206 = sshll.u32 [#allocation8], 4
      %s1207 = int_to_ptr.vmem [resolvable:$true] %s1206
      %1209 = dma.vmem_to_hbm [thread:$0]  %s1207, 128, %s5, [#allocation4]
    $region37: #{_lambda_.1} parent=1 // pred_fallthru
      _
    // Predicated region
    $region38: #{_lambda_.1} parent=1 // pred_check
      _
    $region39: #{_lambda_.1} parent=1 // pred_check_branch
      %1211 = sbr.rel (0) target = $region41
    $region40: #{_lambda_.1} parent=1 // pred_region
      %1212 = dma.done [#allocation4], 128
    $region41: #{_lambda_.1} parent=1 // pred_fallthru
      _
    %1213 = vsyncpa [#allocation3], 1
    %1214 = vsyncpa [#allocation6], 1
    %1215 = vsyncpa [#allocation4], 1

</llo_original>
